<compile_context>
chip_gen: v7x
topology: tpu7x:2x2x1
jax: 0.10.0
libtpu: 0.0.40
codegen_flags: <defaults>
</compile_context>

<pallas_src>
import functools

import jax
import jax.numpy as jnp
from jax.experimental import pallas as pl
from jax.experimental.pallas import tpu as pltpu


def _homosc_partials_kernel(o_ref, l_ref, acc_ref, *, batch, tile_b,
                            tiles_per_split):
    """One (split, tile) grid point.

    o_ref / l_ref : (D, TB) lane-dense blocks (pose components on sublanes,
                    batch on lanes).
    acc_ref       : (1, 1, 8) resident output block for this split; lanes 0..5
                    accumulate [sum_lp, sum_lt, sum_o_p, sum_o_p^2,
                    sum_o_t, sum_o_t^2].
    """
    c = pl.program_id(0)
    i = pl.program_id(1)

    @pl.when(i == 0)
    def _init():
        acc_ref[...] = jnp.zeros(acc_ref.shape, acc_ref.dtype)

    o = o_ref[...].astype(jnp.float32)    # (D, TB)
    lab = l_ref[...].astype(jnp.float32)
    _, TB = o.shape

    # Tail mask (no host-side padding): lanes whose logical batch index >= B
    # (edge block, or a fully-out-of-range block that the clamped index_map
    # re-read) hold unspecified data and must be excluded from every
    # accumulated quantity.  jnp.where/select also stops NaN/Inf garbage.
    start = (c * tiles_per_split + i) * tile_b
    lane = jax.lax.broadcasted_iota(jnp.int32, (1, TB), 1)
    valid = (start + lane) < batch                         # (1, TB)

    diff = jnp.where(valid, o - lab, 0.0)                  # (D, TB)
    om = jnp.where(valid, o, 0.0)

    d2 = diff * diff
    # Static sublane slices: rows 0..2 = position, rows 3.. = orientation.
    # The per-row L2 norm is a cheap sublane (XLU) reduction in this layout.
    lp = jnp.sqrt(jnp.sum(d2[:3, :], axis=0, keepdims=True))   # (1, TB)
    lt = jnp.sqrt(jnp.sum(d2[3:, :], axis=0, keepdims=True))   # (1, TB)

    o2 = om * om
    sum_lp = jnp.sum(lp)
    sum_lt = jnp.sum(lt)
    s1_p = jnp.sum(om[:3, :])
    s2_p = jnp.sum(o2[:3, :])
    s1_t = jnp.sum(om[3:, :])
    s2_t = jnp.sum(o2[3:, :])

    # Pack the six per-tile scalars into lanes 0..5 and accumulate into the
    # resident (1,1,8) output block (no wide VMEM accumulators, no finalize).
    lane8 = jax.lax.broadcasted_iota(jnp.int32, acc_ref.shape, 2)
    zeros = jnp.zeros(acc_ref.shape, jnp.float32)
    vec = jnp.where(lane8 == 0, sum_lp, zeros)
    vec = vec + jnp.where(lane8 == 1, sum_lt, zeros)
    vec = vec + jnp.where(lane8 == 2, s1_p, zeros)
    vec = vec + jnp.where(lane8 == 3, s2_p, zeros)
    vec = vec + jnp.where(lane8 == 4, s1_t, zeros)
    vec = vec + jnp.where(lane8 == 5, s2_t, zeros)
    acc_ref[...] += vec


def homoscedastic_uncertainty_loss(output, label, *, tile_b=16384,
                                   num_splits=2):
    """Pallas-backed forward pass. output, label: [B, D] with D > 3."""
    B, D = output.shape
    assert D > 3, "need at least 3 position + 1 orientation component"

    # Lane-dense relayout (batch -> 128-wide lanes, pose -> sublanes).  Single
    # relayout pass; see header comment for why this beats native [B, D] reads.
    o_t = output.T   # (D, B)
    l_t = label.T

    if B <= tile_b:
        TB = B                          # single block: full-dim exemption from (8,128)
        n_split, tiles_per_split = 1, 1
    else:
        assert tile_b % 128 == 0, "tile_b must be a multiple of 128"
        TB = tile_b
        total_tiles = pl.cdiv(B, TB)
        n_split = num_splits if total_tiles >= num_splits else 1
        tiles_per_split = pl.cdiv(total_tiles, n_split)

    last_block = pl.cdiv(B, TB) - 1

    def in_map(c, i):
        # With the split grid the logical tile index can overhang the array;
        # clamp the fetch (the kernel's lane mask zeroes any such block).
        return (0, jnp.minimum(c * tiles_per_split + i, last_block))

    kernel = functools.partial(_homosc_partials_kernel, batch=B, tile_b=TB,
                               tiles_per_split=tiles_per_split)

    partials = pl.pallas_call(
        kernel,
        out_shape=jax.ShapeDtypeStruct((n_split, 1, 8), jnp.float32),
        grid_spec=pltpu.PrefetchScalarGridSpec(
            num_scalar_prefetch=0,
            grid=(n_split, tiles_per_split),
            in_specs=[
                pl.BlockSpec((D, TB), in_map),
                pl.BlockSpec((D, TB), in_map),
            ],
            out_specs=pl.BlockSpec((1, 1, 8), lambda c, i: (c, 0, 0)),
        ),
        compiler_params=pltpu.CompilerParams(
            # Leading axis: independent batch splits (megacore-shardable on
            # v7x).  Trailing axis: serial reduction over batch tiles.
            dimension_semantics=("parallel", "arbitrary")),
    )(o_t, l_t)

    # Tiny epilogue in plain JAX on the (n_split, 1, 8) partials.
    sums = jnp.sum(partials, axis=(0, 1))          # (8,)
    sum_lp, sum_lt = sums[0], sums[1]
    s1_p, s2_p, s1_t, s2_t = sums[2], sums[3], sums[4], sums[5]

    n_p = jnp.float32(3 * B)
    n_t = jnp.float32((D - 3) * B)
    # torch.var default: all elements of the slice, unbiased (n-1).
    var_p = (s2_p - s1_p * s1_p / n_p) / (n_p - 1.0)
    var_t = (s2_t - s1_t * s1_t / n_t) / (n_t - 1.0)
    s_p = jnp.log(var_p)
    s_t = jnp.log(var_t)
    # exp(-log(var)) == 1/var, computed exactly to preserve reference accuracy.
    return (sum_lp / var_p + sum_lt / var_t) / jnp.float32(B) + s_p + s_t


def _reference(output, label):
    o = output.astype(jnp.float32)
    l = label.astype(jnp.float32)
    l_p = jnp.linalg.norm(o[:, :3] - l[:, :3], axis=1)
    l_t = jnp.linalg.norm(o[:, 3:] - l[:, 3:], axis=1)
    s_p = jnp.log(jnp.var(o[:, :3], ddof=1))
    s_t = jnp.log(jnp.var(o[:, 3:], ddof=1))
    loss = l_p * jnp.exp(-s_p) + s_p + l_t * jnp.exp(-s_t) + s_t
    return jnp.mean(loss)


if __name__ == "__main__":
    key = jax.random.PRNGKey(0)
    k1, k2, k3, k4 = jax.random.split(key, 4)

    # Small pose-regression shape: 3 translation + 4 orientation components.
    B, D = 8, 7
    output = jax.random.normal(k1, (B, D), dtype=jnp.float32)
    label = jax.random.normal(k2, (B, D), dtype=jnp.float32)

    loss = homoscedastic_uncertainty_loss(output, label)
    jax.block_until_ready(loss)
    ref = _reference(output, label)
    assert jnp.allclose(loss, ref, rtol=1e-5, atol=1e-5), (loss, ref)

    # Exercise the tiled path: multi-step grid, 2-way split, tail-masked edge
    # block, and a clamped fully-out-of-range overhang block.
    B2 = 300
    output2 = jax.random.normal(k3, (B2, D), dtype=jnp.float32)
    label2 = jax.random.normal(k4, (B2, D), dtype=jnp.float32)
    loss2 = homoscedastic_uncertainty_loss(output2, label2, tile_b=128,
                                           num_splits=2)
    jax.block_until_ready(loss2)
    ref2 = _reference(output2, label2)
    assert jnp.allclose(loss2, ref2, rtol=1e-5, atol=1e-5), (loss2, ref2)

    print("KERNEL_OK")
</pallas_src>

<mosaic_0001>
module attributes {stable_mosaic.version = 11 : i64} {
  func.func @_homosc_partials_kernel(%arg0: i32, %arg1: i32, %arg2: memref<7x8xf32, #tpu.memory_space<vmem>>, %arg3: memref<7x8xf32, #tpu.memory_space<vmem>>, %arg4: memref<1x1x8xf32, #tpu.memory_space<vmem>>) attributes {dimension_semantics = [#tpu.dimension_semantics<parallel>, #tpu.dimension_semantics<arbitrary>], iteration_bounds = array<i64: 1, 1>, scalar_prefetch = 0 : i64, scratch_operands = 0 : i64, tpu.core_type = #tpu.core_type<tc>, window_params = [{transform_indices = @transform_0, window_bounds = array<i64: 7, 8>}, {transform_indices = @transform_1, window_bounds = array<i64: 7, 8>}, {transform_indices = @transform_2, window_bounds = array<i64: 1, 1, 8>}]} {
    %c0_i32 = arith.constant 0 : i32
    %0 = arith.cmpi eq, %arg1, %c0_i32 : i32
    %1 = arith.extui %0 : i1 to i32
    %c0_i32_0 = arith.constant 0 : i32
    %2 = arith.cmpi ne, %1, %c0_i32_0 : i32
    scf.if %2 {
      %cst_23 = arith.constant 0.000000e+00 : f32
      %94 = vector.broadcast %cst_23 : f32 to vector<1x1x8xf32>
      %c0_24 = arith.constant 0 : index
      %c0_25 = arith.constant 0 : index
      %c0_26 = arith.constant 0 : index
      %95 = vector.load %arg4[%c0_24, %c0_25, %c0_26] : memref<1x1x8xf32, #tpu.memory_space<vmem>>, vector<1x1x8xf32>
      tpu.vector_store %arg4[%c0_24, %c0_25, %c0_26], %94 {strides = array<i32>} : memref<1x1x8xf32, #tpu.memory_space<vmem>>, vector<1x1x8xf32>,
    } else {
    }
    %c0 = arith.constant 0 : index
    %c0_1 = arith.constant 0 : index
    %3 = vector.load %arg2[%c0, %c0_1] : memref<7x8xf32, #tpu.memory_space<vmem>>, vector<7x8xf32>
    %c0_2 = arith.constant 0 : index
    %c0_3 = arith.constant 0 : index
    %4 = vector.load %arg3[%c0_2, %c0_3] : memref<7x8xf32, #tpu.memory_space<vmem>>, vector<7x8xf32>
    %c1_i32 = arith.constant 1 : i32
    %5 = arith.muli %arg0, %c1_i32 : i32
    %6 = arith.addi %5, %arg1 : i32
    %c8_i32 = arith.constant 8 : i32
    %7 = arith.muli %6, %c8_i32 : i32
    %8 = tpu.iota {dimensions = array<i32: 1>} : vector<1x8xi32>
    %9 = vector.broadcast %7 : i32 to vector<1x8xi32>
    %10 = arith.addi %9, %8 : vector<1x8xi32>
    %c8_i32_4 = arith.constant 8 : i32
    %11 = vector.broadcast %c8_i32_4 : i32 to vector<1x8xi32>
    %12 = arith.cmpi slt, %10, %11 : vector<1x8xi32>
    %13 = arith.subf %3, %4 : vector<7x8xf32>
    %cst = arith.constant 0.000000e+00 : f32
    %14 = vector.shape_cast %12 : vector<1x8xi1> to vector<1x8xi1>
    %15 = vector.broadcast %14 : vector<1x8xi1> to vector<7x8xi1>
    %16 = vector.broadcast %cst : f32 to vector<7x8xf32>
    %17 = arith.select %15, %13, %16 : vector<7x8xi1>, vector<7x8xf32>
    %cst_5 = arith.constant 0.000000e+00 : f32
    %18 = vector.shape_cast %12 : vector<1x8xi1> to vector<1x8xi1>
    %19 = vector.broadcast %18 : vector<1x8xi1> to vector<7x8xi1>
    %20 = vector.broadcast %cst_5 : f32 to vector<7x8xf32>
    %21 = arith.select %19, %3, %20 : vector<7x8xi1>, vector<7x8xf32>
    %22 = arith.mulf %17, %17 : vector<7x8xf32>
    %23 = vector.extract_strided_slice %22 {offsets = [0, 0], sizes = [3, 8], strides = [1, 1]} : vector<7x8xf32> to vector<3x8xf32>
    %cst_6 = arith.constant dense<0.000000e+00> : vector<8xf32>
    %24 = vector.multi_reduction <add>, %23, %cst_6 [0] : vector<3x8xf32> to vector<8xf32>
    %25 = vector.shape_cast %24 : vector<8xf32> to vector<1x8xf32>
    %26 = math.sqrt %25 : vector<1x8xf32>
    %27 = vector.extract_strided_slice %22 {offsets = [3, 0], sizes = [4, 8], strides = [1, 1]} : vector<7x8xf32> to vector<4x8xf32>
    %cst_7 = arith.constant dense<0.000000e+00> : vector<8xf32>
    %28 = vector.multi_reduction <add>, %27, %cst_7 [0] : vector<4x8xf32> to vector<8xf32>
    %29 = vector.shape_cast %28 : vector<8xf32> to vector<1x8xf32>
    %30 = math.sqrt %29 : vector<1x8xf32>
    %31 = arith.mulf %21, %21 : vector<7x8xf32>
    %32 = vector.shape_cast %26 : vector<1x8xf32> to vector<1x1x8xf32>
    %cst_8 = arith.constant dense<0.000000e+00> : vector<1xf32>
    %33 = vector.multi_reduction <add>, %32, %cst_8 [1, 2] : vector<1x1x8xf32> to vector<1xf32>
    %34 = vector.shape_cast %33 : vector<1xf32> to vector<1x1x1xf32>
    %35 = vector.extract %34[0, 0, 0] : f32 from vector<1x1x1xf32>
    %36 = vector.shape_cast %30 : vector<1x8xf32> to vector<1x1x8xf32>
    %cst_9 = arith.constant dense<0.000000e+00> : vector<1xf32>
    %37 = vector.multi_reduction <add>, %36, %cst_9 [1, 2] : vector<1x1x8xf32> to vector<1xf32>
    %38 = vector.shape_cast %37 : vector<1xf32> to vector<1x1x1xf32>
    %39 = vector.extract %38[0, 0, 0] : f32 from vector<1x1x1xf32>
    %40 = vector.extract_strided_slice %21 {offsets = [0, 0], sizes = [3, 8], strides = [1, 1]} : vector<7x8xf32> to vector<3x8xf32>
    %41 = vector.shape_cast %40 : vector<3x8xf32> to vector<1x3x8xf32>
    %cst_10 = arith.constant dense<0.000000e+00> : vector<1xf32>
    %42 = vector.multi_reduction <add>, %41, %cst_10 [1, 2] : vector<1x3x8xf32> to vector<1xf32>
    %43 = vector.shape_cast %42 : vector<1xf32> to vector<1x1x1xf32>
    %44 = vector.extract %43[0, 0, 0] : f32 from vector<1x1x1xf32>
    %45 = vector.extract_strided_slice %31 {offsets = [0, 0], sizes = [3, 8], strides = [1, 1]} : vector<7x8xf32> to vector<3x8xf32>
    %46 = vector.shape_cast %45 : vector<3x8xf32> to vector<1x3x8xf32>
    %cst_11 = arith.constant dense<0.000000e+00> : vector<1xf32>
    %47 = vector.multi_reduction <add>, %46, %cst_11 [1, 2] : vector<1x3x8xf32> to vector<1xf32>
    %48 = vector.shape_cast %47 : vector<1xf32> to vector<1x1x1xf32>
    %49 = vector.extract %48[0, 0, 0] : f32 from vector<1x1x1xf32>
    %50 = vector.extract_strided_slice %21 {offsets = [3, 0], sizes = [4, 8], strides = [1, 1]} : vector<7x8xf32> to vector<4x8xf32>
    %51 = vector.shape_cast %50 : vector<4x8xf32> to vector<1x4x8xf32>
    %cst_12 = arith.constant dense<0.000000e+00> : vector<1xf32>
    %52 = vector.multi_reduction <add>, %51, %cst_12 [1, 2] : vector<1x4x8xf32> to vector<1xf32>
    %53 = vector.shape_cast %52 : vector<1xf32> to vector<1x1x1xf32>
    %54 = vector.extract %53[0, 0, 0] : f32 from vector<1x1x1xf32>
    %55 = vector.extract_strided_slice %31 {offsets = [3, 0], sizes = [4, 8], strides = [1, 1]} : vector<7x8xf32> to vector<4x8xf32>
    %56 = vector.shape_cast %55 : vector<4x8xf32> to vector<1x4x8xf32>
    %cst_13 = arith.constant dense<0.000000e+00> : vector<1xf32>
    %57 = vector.multi_reduction <add>, %56, %cst_13 [1, 2] : vector<1x4x8xf32> to vector<1xf32>
    %58 = vector.shape_cast %57 : vector<1xf32> to vector<1x1x1xf32>
    %59 = vector.extract %58[0, 0, 0] : f32 from vector<1x1x1xf32>
    %60 = tpu.iota {dimensions = array<i32: 2>} : vector<1x1x8xi32>
    %cst_14 = arith.constant 0.000000e+00 : f32
    %61 = vector.broadcast %cst_14 : f32 to vector<1x1x8xf32>
    %c0_i32_15 = arith.constant 0 : i32
    %62 = vector.broadcast %c0_i32_15 : i32 to vector<1x1x8xi32>
    %63 = arith.cmpi eq, %60, %62 : vector<1x1x8xi32>
    %64 = vector.broadcast %35 : f32 to vector<1x1x8xf32>
    %65 = arith.select %63, %64, %61 : vector<1x1x8xi1>, vector<1x1x8xf32>
    %c1_i32_16 = arith.constant 1 : i32
    %66 = vector.broadcast %c1_i32_16 : i32 to vector<1x1x8xi32>
    %67 = arith.cmpi eq, %60, %66 : vector<1x1x8xi32>
    %68 = vector.broadcast %39 : f32 to vector<1x1x8xf32>
    %69 = arith.select %67, %68, %61 : vector<1x1x8xi1>, vector<1x1x8xf32>
    %70 = arith.addf %65, %69 : vector<1x1x8xf32>
    %c2_i32 = arith.constant 2 : i32
    %71 = vector.broadcast %c2_i32 : i32 to vector<1x1x8xi32>
    %72 = arith.cmpi eq, %60, %71 : vector<1x1x8xi32>
    %73 = vector.broadcast %44 : f32 to vector<1x1x8xf32>
    %74 = arith.select %72, %73, %61 : vector<1x1x8xi1>, vector<1x1x8xf32>
    %75 = arith.addf %70, %74 : vector<1x1x8xf32>
    %c3_i32 = arith.constant 3 : i32
    %76 = vector.broadcast %c3_i32 : i32 to vector<1x1x8xi32>
    %77 = arith.cmpi eq, %60, %76 : vector<1x1x8xi32>
    %78 = vector.broadcast %49 : f32 to vector<1x1x8xf32>
    %79 = arith.select %77, %78, %61 : vector<1x1x8xi1>, vector<1x1x8xf32>
    %80 = arith.addf %75, %79 : vector<1x1x8xf32>
    %c4_i32 = arith.constant 4 : i32
    %81 = vector.broadcast %c4_i32 : i32 to vector<1x1x8xi32>
    %82 = arith.cmpi eq, %60, %81 : vector<1x1x8xi32>
    %83 = vector.broadcast %54 : f32 to vector<1x1x8xf32>
    %84 = arith.select %82, %83, %61 : vector<1x1x8xi1>, vector<1x1x8xf32>
    %85 = arith.addf %80, %84 : vector<1x1x8xf32>
    %c5_i32 = arith.constant 5 : i32
    %86 = vector.broadcast %c5_i32 : i32 to vector<1x1x8xi32>
    %87 = arith.cmpi eq, %60, %86 : vector<1x1x8xi32>
    %88 = vector.broadcast %59 : f32 to vector<1x1x8xf32>
    %89 = arith.select %87, %88, %61 : vector<1x1x8xi1>, vector<1x1x8xf32>
    %90 = arith.addf %85, %89 : vector<1x1x8xf32>
    %c0_17 = arith.constant 0 : index
    %c0_18 = arith.constant 0 : index
    %c0_19 = arith.constant 0 : index
    %91 = vector.load %arg4[%c0_17, %c0_18, %c0_19] : memref<1x1x8xf32, #tpu.memory_space<vmem>>, vector<1x1x8xf32>
    %92 = arith.addf %91, %90 : vector<1x1x8xf32>
    %c0_20 = arith.constant 0 : index
    %c0_21 = arith.constant 0 : index
    %c0_22 = arith.constant 0 : index
    %93 = vector.load %arg4[%c0_20, %c0_21, %c0_22] : memref<1x1x8xf32, #tpu.memory_space<vmem>>, vector<1x1x8xf32>
    tpu.vector_store %arg4[%c0_20, %c0_21, %c0_22], %92 {strides = array<i32>} : memref<1x1x8xf32, #tpu.memory_space<vmem>>, vector<1x1x8xf32>,
    return
  }
  func.func @transform_0(%arg0: i32, %arg1: i32) -> (i32, i32) {
    %c1_i32 = arith.constant 1 : i32
    %0 = arith.muli %arg0, %c1_i32 : i32
    %1 = arith.addi %0, %arg1 : i32
    %c0_i32 = arith.constant 0 : i32
    %2 = arith.minsi %1, %c0_i32 : i32
    %c0_i32_0 = arith.constant 0 : i32
    %c0_i32_1 = arith.constant 0 : i32
    return %c0_i32_0, %2 : i32, i32
  }
  func.func @transform_1(%arg0: i32, %arg1: i32) -> (i32, i32) {
    %c1_i32 = arith.constant 1 : i32
    %0 = arith.muli %arg0, %c1_i32 : i32
    %1 = arith.addi %0, %arg1 : i32
    %c0_i32 = arith.constant 0 : i32
    %2 = arith.minsi %1, %c0_i32 : i32
    %c0_i32_0 = arith.constant 0 : i32
    %c0_i32_1 = arith.constant 0 : i32
    return %c0_i32_0, %2 : i32, i32
  }
  func.func @transform_2(%arg0: i32, %arg1: i32) -> (i32, i32, i32) {
    %c0_i32 = arith.constant 0 : i32
    %c0_i32_0 = arith.constant 0 : i32
    %c0_i32_1 = arith.constant 0 : i32
    return %arg0, %c0_i32, %c0_i32_0 : i32, i32, i32
  }
}

</mosaic_0001>

<llo_original>
// kernel: tpu_custom_call.1
$region0: #{tpu_custom_call.1}
  #allocation0 [shape = 'u32[]', space=smem, size = 0x4, offset = 0x4, fixed_abs, tag = 'smem constant byte address 0x4 - core index']
  #allocation1 [shape = 'u32[144,128]{1,0:T(1,128)}', space=vmem, size = 0x12000, scoped, tag = 'internal scratch']
  %s0 = inlined_call_operand.hbm [shape: f32[7,8], index: 0, kind: input, shape index: {}]
  %s1 = inlined_call_operand.hbm [shape: f32[7,8], index: 1, kind: input, shape index: {}]
  %s2 = inlined_call_operand.hbm [shape: f32[1,1,8], index: 2, kind: output, shape index: {}]
  %s3 = sld [smem:[#allocation0]]
  $region30: #{tpu_custom_call.1} parent=0
    _
  %s5 = ssub.s32 1, %s3
  %s6 = scalar_select 0, %s5, %s3
  $region1: #{tpu_custom_call.1} parent=0
    #allocation2 [shape = 'u8[4096]{0}', space=vmem, size = 0x1000, scoped, tag = 'input window, operand 0, single buffered']
    #allocation3 [shape = 's32[1]{0}', space=sflag, size = 0x4, scoped, tag = 'scoped memory for tpu_custom_call.1']
    #allocation4 [shape = 's32[1]{0}', space=sflag, size = 0x4, scoped, tag = 'scoped memory for tpu_custom_call.1']
    #allocation5 [shape = 'u8[4096]{0}', space=vmem, size = 0x1000, scoped, tag = 'input window, operand 1, single buffered']
    #allocation6 [shape = 's32[1]{0}', space=sflag, size = 0x4, scoped, tag = 'scoped memory for tpu_custom_call.1']
    #allocation7 [shape = 'u8[512]{0}', space=vmem, size = 0x400, scoped, tag = 'output window, operand 0, single buffered']
    %7 = vsyncpa [#allocation3], 0
    %8 = vsyncpa [#allocation6], 0
    %9 = vsyncpa [#allocation4], 0
    // Predicated region
    $region2: #{tpu_custom_call.1} parent=1 // pred_check
      _
    $region3: #{tpu_custom_call.1} parent=1 // pred_check_branch
      %11 = sbr.rel (0) target = $region5
    $region4: #{tpu_custom_call.1} parent=1 // pred_region
      %s12 = sadd.s32 0, 0
      %p13 = scmp.lt.s32.totalorder %s12, 0
      %s14 = scalar_select %p13, %s12, 0
      %s16 = ssub.s32 128, 128
      %17 = vsyncadd [#allocation3], %s16
      %s18 = smul.addr %s14, 128
      %s19 = scalar_lea.hbm %s0, %s18
      %s21 = sshll.u32 [#allocation2], 4
      %s22 = int_to_ptr.vmem [resolvable:$true] %s21
      %24 = dma.hbm_to_vmem [thread:$0]  %s19, 128, %s22, [#allocation3]
    $region5: #{tpu_custom_call.1} parent=1 // pred_fallthru
      _
    // Predicated region
    $region6: #{tpu_custom_call.1} parent=1 // pred_check
      _
    $region7: #{tpu_custom_call.1} parent=1 // pred_check_branch
      %26 = sbr.rel (0) target = $region9
    $region8: #{tpu_custom_call.1} parent=1 // pred_region
      %s27 = sadd.s32 0, 0
      %p28 = scmp.lt.s32.totalorder %s27, 0
      %s29 = scalar_select %p28, %s27, 0
      %s31 = ssub.s32 128, 128
      %32 = vsyncadd [#allocation6], %s31
      %s33 = smul.addr %s29, 128
      %s34 = scalar_lea.hbm %s1, %s33
      %s36 = sshll.u32 [#allocation5], 4
      %s37 = int_to_ptr.vmem [resolvable:$true] %s36
      %39 = dma.hbm_to_vmem [thread:$0]  %s34, 128, %s37, [#allocation6]
    $region9: #{tpu_custom_call.1} parent=1 // pred_fallthru
      _
    // Predicated region
    $region10: #{tpu_custom_call.1} parent=1 // pred_check
      _
    $region11: #{tpu_custom_call.1} parent=1 // pred_check_branch
      %41 = sbr.rel (0) target = $region13
    $region12: #{tpu_custom_call.1} parent=1 // pred_region
      %42 = dma.done [#allocation3], 128
    $region13: #{tpu_custom_call.1} parent=1 // pred_fallthru
      _
    // Predicated region
    $region14: #{tpu_custom_call.1} parent=1 // pred_check
      _
    $region15: #{tpu_custom_call.1} parent=1 // pred_check_branch
      %44 = sbr.rel (0) target = $region17
    $region16: #{tpu_custom_call.1} parent=1 // pred_region
      %45 = dma.done [#allocation6], 128
    $region17: #{tpu_custom_call.1} parent=1 // pred_fallthru
      _
    %s46 = sadd.s32 0, 0
    %p47 = scmp.lt.s32.totalorder %s46, 0
    %s48 = scalar_select %p47, %s46, 0
    %s49 = sadd.s32 0, 0
    %p50 = scmp.lt.s32.totalorder %s49, 0
    %s51 = scalar_select %p50, %s49, 0
    %p52 = scmp.eq.s32.totalorder 0, 0
    // Predicated region
    $region18: #{tpu_custom_call.1} parent=1 // pred_check
      %p53 = pneg %p52
    $region19: #{tpu_custom_call.1} parent=1 // pred_check_branch
      %55 = sbr.rel (%p53) target = $region21
    $region20: #{tpu_custom_call.1} parent=1 // pred_region
      %vm56 = vcmask 57344
      %57 = vst.msk [vmem:[#allocation7] sm:$0x1] %vm56, 0.0
    $region21: #{tpu_custom_call.1} parent=1 // pred_fallthru
      _
    %v58 = vld [vmem:[#allocation2] sm:$0x7f]
    %v59 = vld [vmem:[#allocation5] sm:$0x7f]
    %s60 = sadd.s32 0, 0
    %s61 = smul.u32 %s60, 8
    %v62 = vlaneseq
    %v63 = vand.u32 %v62, 127
    %v64 = vstv %s61
    %v65 = vadd.s32 %v64, %v63
    %vm66 = vcmp.lt.s32.totalorder %v65, 8
    %v67 = vsub.f32 %v58, %v59
    %v68 = vsel %vm66, 1, 0
    %vm69 = vcmp.eq.s32.totalorder %v68, 1
    %v70 = vsel %vm69, %v67, 0.0
    %v71 = vsel %vm69, %v58, 0.0
    %v72 = vmul.f32 %v70, %v70
    %vm73 = vcmask 59392
    %v74 = vsel %vm73, %v72, 0.0
    %v75 = vrot.slane %v74, 4
    %v76 = vadd.f32 %v74, %v75
    %v77 = vrot.slane %v76, 2
    %v78 = vadd.f32 %v76, %v77
    %v79 = vrot.slane %v78, 1
    %v80 = vadd.f32 %v78, %v79
    %v81 = vrsqrt.pop %v80
    %v82 = vmul.f32 %v80, %v81
    %vm83 = vcmp.eq.f32.partialorder %v80, inf
    %v84 = vsel %vm83, %v80, %v82
    %vm85 = vcmp.eq.f32.partialorder %v80, 0.0
    %v86 = vand.u32 %v80, 2147483648
    %v87 = vsel %vm85, %v86, %v84
    %v89 = vrot.slane %v72, 3
    %vm91 = vcmask 60416
    %v92 = vsel %vm91, %v89, 0.0
    %v93 = vrot.slane %v92, 4
    %v94 = vadd.f32 %v92, %v93
    %v95 = vrot.slane %v94, 2
    %v96 = vadd.f32 %v94, %v95
    %v97 = vrot.slane %v96, 1
    %v98 = vadd.f32 %v96, %v97
    %v99 = vrsqrt.pop %v98
    %v100 = vmul.f32 %v98, %v99
    %vm101 = vcmp.eq.f32.partialorder %v98, inf
    %v102 = vsel %vm101, %v98, %v100
    %vm103 = vcmp.eq.f32.partialorder %v98, 0.0
    %v104 = vand.u32 %v98, 2147483648
    %v105 = vsel %vm103, %v104, %v102
    %v106 = vmul.f32 %v71, %v71
    %vm107 = vcmask 57344
    %v108 = vsel %vm107, %v87, 0.0
    %109 = vadd.xlane.f32.xlu0 %v108
    %v110 = vpop.xlane.xlu0 %109
    %v111 = vrot.slane %v110, 4
    %v112 = vadd.f32 %v110, %v111
    %v113 = vrot.slane %v112, 2
    %v114 = vadd.f32 %v112, %v113
    %v115 = vrot.slane %v114, 1
    %v116 = vadd.f32 %v114, %v115
    %s117 = vtos %v116
    %v118 = vsel %vm107, %v105, 0.0
    %119 = vadd.xlane.f32.xlu0 %v118
    %v120 = vpop.xlane.xlu0 %119
    %v121 = vrot.slane %v120, 4
    %v122 = vadd.f32 %v120, %v121
    %v123 = vrot.slane %v122, 2
    %v124 = vadd.f32 %v122, %v123
    %v125 = vrot.slane %v124, 1
    %v126 = vadd.f32 %v124, %v125
    %s127 = vtos %v126
    %v128 = vsel %vm73, %v71, 0.0
    %129 = vadd.xlane.f32.xlu0 %v128
    %v130 = vpop.xlane.xlu0 %129
    %v131 = vrot.slane %v130, 4
    %v132 = vadd.f32 %v130, %v131
    %v133 = vrot.slane %v132, 2
    %v134 = vadd.f32 %v132, %v133
    %v135 = vrot.slane %v134, 1
    %v136 = vadd.f32 %v134, %v135
    %s137 = vtos %v136
    %v138 = vsel %vm73, %v106, 0.0
    %139 = vadd.xlane.f32.xlu0 %v138
    %v140 = vpop.xlane.xlu0 %139
    %v141 = vrot.slane %v140, 4
    %v142 = vadd.f32 %v140, %v141
    %v143 = vrot.slane %v142, 2
    %v144 = vadd.f32 %v142, %v143
    %v145 = vrot.slane %v144, 1
    %v146 = vadd.f32 %v144, %v145
    %s147 = vtos %v146
    %v149 = vrot.slane %v71, 3
    %v151 = vsel %vm91, %v149, 0.0
    %152 = vadd.xlane.f32.xlu0 %v151
    %v153 = vpop.xlane.xlu0 %152
    %v154 = vrot.slane %v153, 4
    %v155 = vadd.f32 %v153, %v154
    %v156 = vrot.slane %v155, 2
    %v157 = vadd.f32 %v155, %v156
    %v158 = vrot.slane %v157, 1
    %v159 = vadd.f32 %v157, %v158
    %s160 = vtos %v159
    %v162 = vrot.slane %v106, 3
    %v164 = vsel %vm91, %v162, 0.0
    %165 = vadd.xlane.f32.xlu0 %v164
    %v166 = vpop.xlane.xlu0 %165
    %v167 = vrot.slane %v166, 4
    %v168 = vadd.f32 %v166, %v167
    %v169 = vrot.slane %v168, 2
    %v170 = vadd.f32 %v168, %v169
    %v171 = vrot.slane %v170, 1
    %v172 = vadd.f32 %v170, %v171
    %s173 = vtos %v172
    %vm174 = vcmp.eq.s32.totalorder %v63, 0
    %v175 = vstv %s117
    %v176 = vsel %vm174, %v175, 0.0
    %vm177 = vcmp.eq.s32.totalorder %v63, 1
    %v178 = vstv %s127
    %v179 = vsel %vm177, %v178, 0.0
    %v180 = vadd.f32 %v176, %v179
    %vm181 = vcmp.eq.s32.totalorder %v63, 2
    %v182 = vstv %s137
    %v183 = vsel %vm181, %v182, 0.0
    %v184 = vadd.f32 %v180, %v183
    %vm185 = vcmp.eq.s32.totalorder %v63, 3
    %v186 = vstv %s147
    %v187 = vsel %vm185, %v186, 0.0
    %v188 = vadd.f32 %v184, %v187
    %vm189 = vcmp.eq.s32.totalorder %v63, 4
    %v190 = vstv %s160
    %v191 = vsel %vm189, %v190, 0.0
    %v192 = vadd.f32 %v188, %v191
    %vm193 = vcmp.eq.s32.totalorder %v63, 5
    %v194 = vstv %s173
    %v195 = vsel %vm193, %v194, 0.0
    %v196 = vadd.f32 %v192, %v195
    %v197 = vld [vmem:[#allocation7] sm:$0x1]
    %v198 = vadd.f32 %v197, %v196
    %199 = vst.msk [vmem:[#allocation7] sm:$0x1] %vm107, %v198
    // Predicated region
    $region22: #{tpu_custom_call.1} parent=1 // pred_check
      _
    $region23: #{tpu_custom_call.1} parent=1 // pred_check_branch
      %201 = sbr.rel (0) target = $region25
    $region24: #{tpu_custom_call.1} parent=1 // pred_region
      %s203 = ssub.s32 16, 16
      %204 = vsyncadd [#allocation4], %s203
      %s206 = sshll.u32 [#allocation7], 4
      %s207 = int_to_ptr.vmem [resolvable:$true] %s206
      %209 = dma.vmem_to_hbm [thread:$0]  %s207, 16, %s2, [#allocation4]
    $region25: #{tpu_custom_call.1} parent=1 // pred_fallthru
      _
    // Predicated region
    $region26: #{tpu_custom_call.1} parent=1 // pred_check
      _
    $region27: #{tpu_custom_call.1} parent=1 // pred_check_branch
      %211 = sbr.rel (0) target = $region29
    $region28: #{tpu_custom_call.1} parent=1 // pred_region
      %212 = dma.done [#allocation4], 16
    $region29: #{tpu_custom_call.1} parent=1 // pred_fallthru
      _
    %213 = vsyncpa [#allocation3], 1
    %214 = vsyncpa [#allocation6], 1
    %215 = vsyncpa [#allocation4], 1

</llo_original>
